<compile_context>
chip_gen: v6e
topology: v6e:2x2x1
jax: 0.10.0
libtpu: 0.0.40
codegen_flags: <defaults>
</compile_context>

<pallas_src>
import functools

import jax
import jax.numpy as jnp
from jax.experimental import pallas as pl
from jax.experimental.pallas import tpu as pltpu


def _round_up(x, m):
    return ((x + m - 1) // m) * m


def _tpu_kind():
    try:
        return jax.devices()[0].device_kind.lower()
    except Exception:
        return ""


def _label_smooth_bce_kernel(
    logits_ref,
    labels_ref,
    out_ref,
    *,
    smoothing,
    n_rows,
    n_cols,
    tile_b,
    chunk_rows,
    tiles_per_shard,
    mask_possible,
):
    h = pl.program_id(0)  # shard ("parallel")
    i = pl.program_id(1)  # batch-tile within shard ("arbitrary" reduction axis)

    # Zero the per-shard accumulator (the VMEM-resident output block) once per shard.
    @pl.when(i == 0)
    def _init():
        out_ref[...] = jnp.zeros_like(out_ref)

    t = h * tiles_per_shard + i  # logical (unclamped) tile index
    num_chunks = tile_b // chunk_rows

    def tile_partial(masked):
        # Walk the tile in sublane-aligned row chunks; fold each (chunk_rows, C)
        # chunk down to (8, C) with pure VPU adds (no cross-lane XLU reduce) and
        # carry the running (8, C) partial in vregs.  Avoids materializing a full
        # (tile_b, C) f32 loss tile in VMEM.
        def body(k, acc):
            r0 = k * chunk_rows
            if num_chunks > 1:
                r0 = pl.multiple_of(r0, chunk_rows)
            x = logits_ref[pl.ds(r0, chunk_rows), :].astype(jnp.float32)
            y = labels_ref[pl.ds(r0, chunk_rows), :].astype(jnp.float32)

            # Label smoothing, affine form (valid for exactly-{0,1} labels):
            #   y==1 -> 1 - smoothing ; y==0 -> smoothing
            y_s = smoothing + y * (1.0 - 2.0 * smoothing)

            # Numerically stable BCE-with-logits (same formula PyTorch uses):
            #   loss = max(x, 0) - x*y + log1p(exp(-|x|))
            loss = jnp.maximum(x, 0.0) - x * y_s + jnp.log1p(jnp.exp(-jnp.abs(x)))

            if masked:
                rows = (
                    t * tile_b
                    + r0
                    + jax.lax.broadcasted_iota(jnp.int32, (chunk_rows, n_cols), 0)
                )
                # Select (not multiply) so NaN/Inf from unspecified OOB rows is discarded.
                loss = jnp.where(rows < n_rows, loss, 0.0)

            return acc + loss.reshape(chunk_rows // 8, 8, n_cols).sum(axis=0)

        acc0 = jnp.zeros((8, n_cols), jnp.float32)
        if num_chunks == 1:
            return body(0, acc0)
        return jax.lax.fori_loop(0, num_chunks, body, acc0, unroll=min(num_chunks, 8))

    if not mask_possible:
        # Statically known: every tile is full -> no masking work at all.
        out_ref[0] += tile_partial(masked=False)
    else:
        # Only the ragged last tile / clamped duplicate tiles pay the mask cost.
        tile_has_oob_rows = (t + 1) * tile_b > n_rows

        @pl.when(jnp.logical_not(tile_has_oob_rows))
        def _full():
            out_ref[0] += tile_partial(masked=False)

        @pl.when(tile_has_oob_rows)
        def _ragged():
            out_ref[0] += tile_partial(masked=True)


def label_smoothing_bce(logits, labels, smoothing=0.09, *, num_shards=None, per_step_bytes=None):
    assert logits.shape == labels.shape and logits.ndim == 2, "expect 2-D (batch, classes) inputs"
    B, C = logits.shape

    kind = _tpu_kind()
    is_v7x = "v7" in kind
    if num_shards is None:
        # Two TensorCores only on v7x; a single-TC chip just pays overhead for 2 shards.
        num_shards = 2 if is_v7x else 1
    if per_step_bytes is None:
        # Bytes of (logits + labels) DMA'd per grid step (doubled by double-buffering).
        # v7x: 64 MiB VMEM/TC -> keep 2 x 12 MiB of input buffers.
        # v5e/v6e: 128 MiB VMEM -> 2 x 24 MiB buffers amortize the per-step overhead further.
        per_step_bytes = (12 if is_v7x else 24) * 1024 * 1024

    logit_bytes = jnp.dtype(logits.dtype).itemsize
    label_bytes = jnp.dtype(labels.dtype).itemsize
    bytes_per_row = C * (logit_bytes + label_bytes)

    # Inner compute chunk: multiple of 32 rows (clean sublane packing for int8/bf16
    # labels), sized so the f32 loss intermediate stays ~<= 512 KiB.
    chunk_rows = (512 * 1024) // (4 * C)
    chunk_rows = max(32, min(512, (chunk_rows // 32) * 32))
    chunk_rows = min(chunk_rows, _round_up(B, 32))

    # Batch tile: as many chunks as fit the per-step byte budget, never (much)
    # more than the batch itself.
    tile_b = max(chunk_rows, (per_step_bytes // bytes_per_row) // chunk_rows * chunk_rows)
    tile_b = min(tile_b, _round_up(B, chunk_rows))

    total_tiles = pl.cdiv(B, tile_b)
    tiles_per_shard = pl.cdiv(total_tiles, num_shards)
    mask_possible = (B % tile_b != 0) or (num_shards * tiles_per_shard != total_tiles)

    def tile_index(h, i):
        t = h * tiles_per_shard + i
        # Clamp so shards with no remaining real work re-read the last valid block
        # (their contribution is masked to zero in-kernel) instead of going OOB.
        return (jnp.minimum(t, total_tiles - 1), 0)

    kernel = functools.partial(
        _label_smooth_bce_kernel,
        smoothing=float(smoothing),
        n_rows=B,
        n_cols=C,
        tile_b=tile_b,
        chunk_rows=chunk_rows,
        tiles_per_shard=tiles_per_shard,
        mask_possible=mask_possible,
    )

    # Double-buffered input tiles + accumulator/intermediates + margin; always
    # below physical VMEM on v5e/v6e (128 MiB) and v7x (64 MiB).
    vmem_limit_bytes = int(max(32 * 1024 * 1024, 2 * tile_b * bytes_per_row + (8 << 20)))

    partials = pl.pallas_call(
        kernel,
        out_shape=jax.ShapeDtypeStruct((num_shards, 8, C), jnp.float32),
        grid=(num_shards, tiles_per_shard),
        in_specs=[
            pl.BlockSpec((tile_b, C), tile_index),
            pl.BlockSpec((tile_b, C), tile_index),
        ],
        out_specs=pl.BlockSpec((1, 8, C), lambda h, i: (h, 0, 0)),
        compiler_params=pltpu.CompilerParams(
            # TODO(synk): on v7x, verify in the trace that the shard axis really splits
            # across both TensorCores; if not, switch this axis to pltpu.CORE_PARALLEL.
            dimension_semantics=("parallel", "arbitrary"),
            vmem_limit_bytes=vmem_limit_bytes,
        ),
    )(logits, labels)

    # Single tiny cross-lane reduce outside the kernel; mean over the true count.
    return jnp.sum(partials) / jnp.float32(B * C)


if __name__ == "__main__":
    key = jax.random.PRNGKey(0)
    k_logits, k_labels = jax.random.split(key)

    batch, num_classes = 48, 128  # small, lane-aligned demo; batch exercises the ragged-mask path
    logits = jax.random.normal(k_logits, (batch, num_classes), dtype=jnp.float32)
    labels01 = jax.random.bernoulli(k_labels, p=0.5, shape=(batch, num_classes))
    labels = labels01.astype(jnp.int8)  # {0,1} is lossless in int8 -> 4x less label HBM traffic

    loss = label_smoothing_bce(logits, labels, smoothing=0.09)
    jax.block_until_ready(loss)

    # Pure-JAX reference matching the PyTorch module exactly.
    y = labels01.astype(jnp.float32)
    y_ref = jnp.where(y == 1.0, 1.0 - 0.09, y)
    y_ref = jnp.where(y_ref == 0.0, 0.09, y_ref)
    ref = jnp.mean(
        jnp.maximum(logits, 0.0) - logits * y_ref + jnp.log1p(jnp.exp(-jnp.abs(logits)))
    )
    assert jnp.allclose(loss, ref, rtol=1e-5, atol=1e-5), (loss, ref)

    print("KERNEL_OK")
</pallas_src>

<mosaic_0001>
module attributes {stable_mosaic.version = 11 : i64} {
  func.func @_label_smooth_bce_kernel(%arg0: i32, %arg1: i32, %arg2: memref<64x128xf32, #tpu.memory_space<vmem>>, %arg3: memref<64x128xi8, #tpu.memory_space<vmem>>, %arg4: memref<1x8x128xf32, #tpu.memory_space<vmem>>) attributes {dimension_semantics = [#tpu.dimension_semantics<parallel>, #tpu.dimension_semantics<arbitrary>], iteration_bounds = array<i64: 1, 1>, scalar_prefetch = 0 : i64, scratch_operands = 0 : i64, tpu.core_type = #tpu.core_type<tc>, window_params = [{transform_indices = @transform_0, window_bounds = array<i64: 64, 128>}, {transform_indices = @transform_1, window_bounds = array<i64: 64, 128>}, {transform_indices = @transform_2, window_bounds = array<i64: 1, 8, 128>}]} {
    %c0_i32 = arith.constant 0 : i32
    %0 = arith.cmpi eq, %arg1, %c0_i32 : i32
    %1 = arith.extui %0 : i1 to i32
    %c0_i32_0 = arith.constant 0 : i32
    %2 = arith.cmpi ne, %1, %c0_i32_0 : i32
    scf.if %2 {
      %cst = arith.constant 0.000000e+00 : f32
      %13 = vector.broadcast %cst : f32 to vector<1x8x128xf32>
      %c0 = arith.constant 0 : index
      %c0_4 = arith.constant 0 : index
      %c0_5 = arith.constant 0 : index
      %14 = vector.load %arg4[%c0, %c0_4, %c0_5] : memref<1x8x128xf32, #tpu.memory_space<vmem>>, vector<1x8x128xf32>
      tpu.vector_store %arg4[%c0, %c0_4, %c0_5], %13 {strides = array<i32>} : memref<1x8x128xf32, #tpu.memory_space<vmem>>, vector<1x8x128xf32>,
    } else {
    }
    %c1_i32 = arith.constant 1 : i32
    %3 = arith.muli %arg0, %c1_i32 : i32
    %4 = arith.addi %3, %arg1 : i32
    %c1_i32_1 = arith.constant 1 : i32
    %5 = arith.addi %4, %c1_i32_1 : i32
    %c64_i32 = arith.constant 64 : i32
    %6 = arith.muli %5, %c64_i32 : i32
    %c48_i32 = arith.constant 48 : i32
    %7 = arith.cmpi sgt, %6, %c48_i32 : i32
    %true = arith.constant true
    %8 = arith.xori %7, %true : i1
    %9 = arith.extui %8 : i1 to i32
    %c0_i32_2 = arith.constant 0 : i32
    %10 = arith.cmpi ne, %9, %c0_i32_2 : i32
    scf.if %10 {
      %c0 = arith.constant 0 : index
      %c0_4 = arith.constant 0 : index
      %c0_5 = arith.constant 0 : index
      %13 = vector.load %arg4[%c0, %c0_4, %c0_5] : memref<1x8x128xf32, #tpu.memory_space<vmem>>, vector<1x8x128xf32>
      %14 = vector.shape_cast %13 : vector<1x8x128xf32> to vector<8x128xf32>
      %cst = arith.constant 0.000000e+00 : f32
      %15 = vector.broadcast %cst : f32 to vector<8x128xf32>
      %c0_6 = arith.constant 0 : index
      %c0_7 = arith.constant 0 : index
      %16 = vector.load %arg2[%c0_6, %c0_7] : memref<64x128xf32, #tpu.memory_space<vmem>>, vector<64x128xf32>
      %c0_8 = arith.constant 0 : index
      %c0_9 = arith.constant 0 : index
      %17 = vector.load %arg3[%c0_8, %c0_9] : memref<64x128xi8, #tpu.memory_space<vmem>>, vector<64x128xi8>
      %18 = arith.sitofp %17 : vector<64x128xi8> to vector<64x128xf32>
      %cst_10 = arith.constant 0.819999992 : f32
      %19 = vector.broadcast %cst_10 : f32 to vector<64x128xf32>
      %20 = arith.mulf %18, %19 : vector<64x128xf32>
      %cst_11 = arith.constant 9.000000e-02 : f32
      %21 = vector.broadcast %cst_11 : f32 to vector<64x128xf32>
      %22 = arith.addf %21, %20 : vector<64x128xf32>
      %cst_12 = arith.constant 0.000000e+00 : f32
      %23 = vector.broadcast %cst_12 : f32 to vector<64x128xf32>
      %24 = arith.maximumf %16, %23 : vector<64x128xf32>
      %25 = arith.mulf %16, %22 : vector<64x128xf32>
      %26 = arith.subf %24, %25 : vector<64x128xf32>
      %27 = math.absf %16 : vector<64x128xf32>
      %cst_13 = arith.constant 0.000000e+00 : f32
      %28 = vector.broadcast %cst_13 : f32 to vector<64x128xf32>
      %29 = arith.subf %28, %27 : vector<64x128xf32>
      %30 = math.exp %29 : vector<64x128xf32>
      %31 = math.log1p %30 : vector<64x128xf32>
      %32 = arith.addf %26, %31 : vector<64x128xf32>
      %33 = vector.shape_cast %32 : vector<64x128xf32> to vector<8x8x128xf32>
      %cst_14 = arith.constant dense<0.000000e+00> : vector<8x128xf32>
      %34 = vector.multi_reduction <add>, %33, %cst_14 [0] : vector<8x8x128xf32> to vector<8x128xf32>
      %35 = arith.addf %15, %34 : vector<8x128xf32>
      %36 = arith.addf %14, %35 : vector<8x128xf32>
      %c0_15 = arith.constant 0 : index
      %c0_16 = arith.constant 0 : index
      %c0_17 = arith.constant 0 : index
      %37 = vector.load %arg4[%c0_15, %c0_16, %c0_17] : memref<1x8x128xf32, #tpu.memory_space<vmem>>, vector<1x8x128xf32>
      %38 = vector.shape_cast %37 : vector<1x8x128xf32> to vector<8x128xf32>
      %39 = vector.shape_cast %36 : vector<8x128xf32> to vector<1x8x128xf32>
      tpu.vector_store %arg4[%c0_15, %c0_16, %c0_17], %39 {strides = array<i32>} : memref<1x8x128xf32, #tpu.memory_space<vmem>>, vector<1x8x128xf32>,
    } else {
    }
    %11 = arith.extui %7 : i1 to i32
    %c0_i32_3 = arith.constant 0 : i32
    %12 = arith.cmpi ne, %11, %c0_i32_3 : i32
    scf.if %12 {
      %c0 = arith.constant 0 : index
      %c0_4 = arith.constant 0 : index
      %c0_5 = arith.constant 0 : index
      %13 = vector.load %arg4[%c0, %c0_4, %c0_5] : memref<1x8x128xf32, #tpu.memory_space<vmem>>, vector<1x8x128xf32>
      %14 = vector.shape_cast %13 : vector<1x8x128xf32> to vector<8x128xf32>
      %cst = arith.constant 0.000000e+00 : f32
      %15 = vector.broadcast %cst : f32 to vector<8x128xf32>
      %c0_6 = arith.constant 0 : index
      %c0_7 = arith.constant 0 : index
      %16 = vector.load %arg2[%c0_6, %c0_7] : memref<64x128xf32, #tpu.memory_space<vmem>>, vector<64x128xf32>
      %c0_8 = arith.constant 0 : index
      %c0_9 = arith.constant 0 : index
      %17 = vector.load %arg3[%c0_8, %c0_9] : memref<64x128xi8, #tpu.memory_space<vmem>>, vector<64x128xi8>
      %18 = arith.sitofp %17 : vector<64x128xi8> to vector<64x128xf32>
      %cst_10 = arith.constant 0.819999992 : f32
      %19 = vector.broadcast %cst_10 : f32 to vector<64x128xf32>
      %20 = arith.mulf %18, %19 : vector<64x128xf32>
      %cst_11 = arith.constant 9.000000e-02 : f32
      %21 = vector.broadcast %cst_11 : f32 to vector<64x128xf32>
      %22 = arith.addf %21, %20 : vector<64x128xf32>
      %cst_12 = arith.constant 0.000000e+00 : f32
      %23 = vector.broadcast %cst_12 : f32 to vector<64x128xf32>
      %24 = arith.maximumf %16, %23 : vector<64x128xf32>
      %25 = arith.mulf %16, %22 : vector<64x128xf32>
      %26 = arith.subf %24, %25 : vector<64x128xf32>
      %27 = math.absf %16 : vector<64x128xf32>
      %cst_13 = arith.constant 0.000000e+00 : f32
      %28 = vector.broadcast %cst_13 : f32 to vector<64x128xf32>
      %29 = arith.subf %28, %27 : vector<64x128xf32>
      %30 = math.exp %29 : vector<64x128xf32>
      %31 = math.log1p %30 : vector<64x128xf32>
      %32 = arith.addf %26, %31 : vector<64x128xf32>
      %c64_i32_14 = arith.constant 64 : i32
      %33 = arith.muli %4, %c64_i32_14 : i32
      %c0_i32_15 = arith.constant 0 : i32
      %34 = arith.addi %33, %c0_i32_15 : i32
      %35 = tpu.iota {dimensions = array<i32: 0>} : vector<64x128xi32>
      %36 = vector.broadcast %34 : i32 to vector<64x128xi32>
      %37 = arith.addi %36, %35 : vector<64x128xi32>
      %c48_i32_16 = arith.constant 48 : i32
      %38 = vector.broadcast %c48_i32_16 : i32 to vector<64x128xi32>
      %39 = arith.cmpi slt, %37, %38 : vector<64x128xi32>
      %cst_17 = arith.constant 0.000000e+00 : f32
      %40 = vector.broadcast %cst_17 : f32 to vector<64x128xf32>
      %41 = arith.select %39, %32, %40 : vector<64x128xi1>, vector<64x128xf32>
      %42 = vector.shape_cast %41 : vector<64x128xf32> to vector<8x8x128xf32>
      %cst_18 = arith.constant dense<0.000000e+00> : vector<8x128xf32>
      %43 = vector.multi_reduction <add>, %42, %cst_18 [0] : vector<8x8x128xf32> to vector<8x128xf32>
      %44 = arith.addf %15, %43 : vector<8x128xf32>
      %45 = arith.addf %14, %44 : vector<8x128xf32>
      %c0_19 = arith.constant 0 : index
      %c0_20 = arith.constant 0 : index
      %c0_21 = arith.constant 0 : index
      %46 = vector.load %arg4[%c0_19, %c0_20, %c0_21] : memref<1x8x128xf32, #tpu.memory_space<vmem>>, vector<1x8x128xf32>
      %47 = vector.shape_cast %46 : vector<1x8x128xf32> to vector<8x128xf32>
      %48 = vector.shape_cast %45 : vector<8x128xf32> to vector<1x8x128xf32>
      tpu.vector_store %arg4[%c0_19, %c0_20, %c0_21], %48 {strides = array<i32>} : memref<1x8x128xf32, #tpu.memory_space<vmem>>, vector<1x8x128xf32>,
    } else {
    }
    return
  }
  func.func @transform_0(%arg0: i32, %arg1: i32) -> (i32, i32) {
    %c1_i32 = arith.constant 1 : i32
    %0 = arith.muli %arg0, %c1_i32 : i32
    %1 = arith.addi %0, %arg1 : i32
    %c0_i32 = arith.constant 0 : i32
    %2 = arith.minsi %1, %c0_i32 : i32
    %c0_i32_0 = arith.constant 0 : i32
    %c0_i32_1 = arith.constant 0 : i32
    return %2, %c0_i32_0 : i32, i32
  }
  func.func @transform_1(%arg0: i32, %arg1: i32) -> (i32, i32) {
    %c1_i32 = arith.constant 1 : i32
    %0 = arith.muli %arg0, %c1_i32 : i32
    %1 = arith.addi %0, %arg1 : i32
    %c0_i32 = arith.constant 0 : i32
    %2 = arith.minsi %1, %c0_i32 : i32
    %c0_i32_0 = arith.constant 0 : i32
    %c0_i32_1 = arith.constant 0 : i32
    return %2, %c0_i32_0 : i32, i32
  }
  func.func @transform_2(%arg0: i32, %arg1: i32) -> (i32, i32, i32) {
    %c0_i32 = arith.constant 0 : i32
    %c0_i32_0 = arith.constant 0 : i32
    %c0_i32_1 = arith.constant 0 : i32
    return %arg0, %c0_i32, %c0_i32_0 : i32, i32, i32
  }
}

</mosaic_0001>

<llo_original>
// kernel: tpu_custom_call.1
$region0: #{tpu_custom_call.1}
  #allocation0 [shape = 'u32[]', space=smem, size = 0x4, offset = 0x4, fixed_abs, tag = 'smem constant byte address 0x4 - core index']
  #allocation1 [shape = 'u32[144,128]{1,0:T(1,128)}', space=vmem, size = 0x12000, scoped, tag = 'internal scratch']
  %s0 = inlined_call_operand.hbm [shape: f32[48,128], index: 0, kind: input, shape index: {}]
  %s1 = inlined_call_operand.hbm [shape: s8[48,128], index: 1, kind: input, shape index: {}]
  %s2 = inlined_call_operand.hbm [shape: f32[1,8,128], index: 2, kind: output, shape index: {}]
  %s3 = sld [smem:[#allocation0]]
  $region38: #{tpu_custom_call.1} parent=0
    _
  %s5 = ssub.s32 1, %s3
  %s6 = scalar_select 0, %s5, %s3
  $region1: #{tpu_custom_call.1} parent=0
    #allocation2 [shape = 'u8[32768]{0}', space=vmem, size = 0x8000, scoped, tag = 'input window, operand 0, single buffered']
    #allocation3 [shape = 's32[1]{0}', space=sflag, size = 0x4, scoped, tag = 'scoped memory for tpu_custom_call.1']
    #allocation4 [shape = 's32[1]{0}', space=sflag, size = 0x4, scoped, tag = 'scoped memory for tpu_custom_call.1']
    #allocation5 [shape = 'u8[8192]{0}', space=vmem, size = 0x2000, scoped, tag = 'input window, operand 1, single buffered']
    #allocation6 [shape = 's32[1]{0}', space=sflag, size = 0x4, scoped, tag = 'scoped memory for tpu_custom_call.1']
    #allocation7 [shape = 'u8[4096]{0}', space=vmem, size = 0x1000, scoped, tag = 'output window, operand 0, single buffered']
    %7 = vsyncpa [#allocation3], 0
    %8 = vsyncpa [#allocation6], 0
    %9 = vsyncpa [#allocation4], 0
    // Predicated region
    $region2: #{tpu_custom_call.1} parent=1 // pred_check
      _
    $region3: #{tpu_custom_call.1} parent=1 // pred_check_branch
      %11 = sbr.rel (0) target = $region5
    $region4: #{tpu_custom_call.1} parent=1 // pred_region
      %s12 = sadd.s32 0, 0
      %p13 = scmp.lt.s32.totalorder %s12, 0
      %s14 = scalar_select %p13, %s12, 0
      %s15 = smul.u32 8, %s14
      %s16 = ssub.s32 6, %s15
      %s17 = smul.u32 128, %s16
      %s19 = ssub.s32 1024, %s17
      %20 = vsyncadd [#allocation3], %s19
      %p21 = scmp.ne.s32.totalorder 0, %s17
      %s22 = smul.addr %s15, 128
      %s23 = scalar_lea.hbm %s0, %s22
      %s24 = smul.u32 8, %s16
      %s25 = sshll.u32 [#allocation2], 4
      %s26 = int_to_ptr.vmem [resolvable:$true] %s25
      %s27 = sshll.u32 %s24, 4
      %31 = dma.hbm_to_vmem [thread:$0]  (%p21), %s23, %s27, %s26, [#allocation3], 128, 128, 8
    $region5: #{tpu_custom_call.1} parent=1 // pred_fallthru
      _
    // Predicated region
    $region6: #{tpu_custom_call.1} parent=1 // pred_check
      _
    $region7: #{tpu_custom_call.1} parent=1 // pred_check_branch
      %33 = sbr.rel (0) target = $region9
    $region8: #{tpu_custom_call.1} parent=1 // pred_region
      %s34 = sadd.s32 0, 0
      %p35 = scmp.lt.s32.totalorder %s34, 0
      %s36 = scalar_select %p35, %s34, 0
      %s37 = smul.u32 8, %s36
      %s38 = ssub.s32 6, %s37
      %s39 = smul.u32 32, %s38
      %s41 = ssub.s32 256, %s39
      %42 = vsyncadd [#allocation6], %s41
      %p43 = scmp.ne.s32.totalorder 0, %s39
      %s44 = smul.addr %s37, 32
      %s45 = scalar_lea.hbm %s1, %s44
      %s46 = smul.u32 2, %s38
      %s47 = sshll.u32 [#allocation5], 4
      %s48 = int_to_ptr.vmem [resolvable:$true] %s47
      %s49 = sshll.u32 %s46, 4
      %53 = dma.hbm_to_vmem [thread:$0]  (%p43), %s45, %s49, %s48, [#allocation6], 32, 32, 2
    $region9: #{tpu_custom_call.1} parent=1 // pred_fallthru
      _
    // Predicated region
    $region10: #{tpu_custom_call.1} parent=1 // pred_check
      _
    $region11: #{tpu_custom_call.1} parent=1 // pred_check_branch
      %55 = sbr.rel (0) target = $region13
    $region12: #{tpu_custom_call.1} parent=1 // pred_region
      %56 = dma.done [#allocation3], 1024
    $region13: #{tpu_custom_call.1} parent=1 // pred_fallthru
      _
    // Predicated region
    $region14: #{tpu_custom_call.1} parent=1 // pred_check
      _
    $region15: #{tpu_custom_call.1} parent=1 // pred_check_branch
      %58 = sbr.rel (0) target = $region17
    $region16: #{tpu_custom_call.1} parent=1 // pred_region
      %59 = dma.done [#allocation6], 256
    $region17: #{tpu_custom_call.1} parent=1 // pred_fallthru
      _
    %s60 = sadd.s32 0, 0
    %p61 = scmp.lt.s32.totalorder %s60, 0
    %s62 = scalar_select %p61, %s60, 0
    %s63 = smul.u32 8, %s62
    %s64 = ssub.s32 6, %s63
    %s65 = smul.u32 128, %s64
    %s66 = sadd.s32 0, 0
    %p67 = scmp.lt.s32.totalorder %s66, 0
    %s68 = scalar_select %p67, %s66, 0
    %s69 = smul.u32 8, %s68
    %s70 = ssub.s32 6, %s69
    %s71 = smul.u32 32, %s70
    %p72 = scmp.eq.s32.totalorder 0, 0
    // Predicated region
    $region18: #{tpu_custom_call.1} parent=1 // pred_check
      %p73 = pneg %p72
    $region19: #{tpu_custom_call.1} parent=1 // pred_check_branch
      %75 = sbr.rel (%p73) target = $region21
    $region20: #{tpu_custom_call.1} parent=1 // pred_region
      %76 = vst [vmem:[#allocation7] sm:$0xff] 0.0
    $region21: #{tpu_custom_call.1} parent=1 // pred_fallthru
      _
    %s77 = sadd.s32 0, 0
    %s78 = sadd.s32 %s77, 1
    %s79 = smul.u32 %s78, 64
    %p80 = scmp.gt.s32.totalorder %s79, 48
    %p81 = scmp.le.s32.totalorder %s79, 48
    // Predicated region
    $region22: #{tpu_custom_call.1} parent=1 // pred_check
      %p82 = pneg %p81
    $region23: #{tpu_custom_call.1} parent=1 // pred_check_branch
      %84 = sbr.rel (%p82) target = $region25
    $region24: #{tpu_custom_call.1} parent=1 // pred_region
      %v85 = vld [vmem:[#allocation7] sm:$0xff]
      %v86 = vld [vmem:[#allocation2] sm:$0xff]
      %v87 = vld [vmem:[#allocation2 + $0x8] sm:$0xff]
      %v88 = vld [vmem:[#allocation2 + $0x10] sm:$0xff]
      %v89 = vld [vmem:[#allocation2 + $0x18] sm:$0xff]
      %v90 = vld [vmem:[#allocation2 + $0x20] sm:$0xff]
      %v91 = vld [vmem:[#allocation2 + $0x28] sm:$0xff]
      %v92 = vld [vmem:[#allocation2 + $0x30] sm:$0xff]
      %v93 = vld [vmem:[#allocation2 + $0x38] sm:$0xff]
      %v94 = vld [vmem:[#allocation5] sm:$0x3]
      %v95 = vld [vmem:[#allocation5 + $0x2] sm:$0x3]
      %v96 = vld [vmem:[#allocation5 + $0x4] sm:$0x3]
      %v97 = vld [vmem:[#allocation5 + $0x6] sm:$0x3]
      %v98 = vld [vmem:[#allocation5 + $0x8] sm:$0x3]
      %v99 = vld [vmem:[#allocation5 + $0xa] sm:$0x3]
      %v100 = vld [vmem:[#allocation5 + $0xc] sm:$0x3]
      %v101 = vld [vmem:[#allocation5 + $0xe] sm:$0x3]
      %v102 = vunpack.c.0.s8 %v94
      %v103 = vunpack.c.0.s8 %v95
      %v104 = vunpack.c.0.s8 %v96
      %v105 = vunpack.c.0.s8 %v97
      %v106 = vunpack.c.0.s8 %v98
      %v107 = vunpack.c.0.s8 %v99
      %v108 = vunpack.c.0.s8 %v100
      %v109 = vunpack.c.0.s8 %v101
      %v110 = vcvt.s32.f32 %v102
      %v111 = vcvt.s32.f32 %v103
      %v112 = vcvt.s32.f32 %v104
      %v113 = vcvt.s32.f32 %v105
      %v114 = vcvt.s32.f32 %v106
      %v115 = vcvt.s32.f32 %v107
      %v116 = vcvt.s32.f32 %v108
      %v117 = vcvt.s32.f32 %v109
      %v118 = vmul.f32 %v110, 0.82
      %v119 = vmul.f32 %v111, 0.82
      %v120 = vmul.f32 %v112, 0.82
      %v121 = vmul.f32 %v113, 0.82
      %v122 = vmul.f32 %v114, 0.82
      %v123 = vmul.f32 %v115, 0.82
      %v124 = vmul.f32 %v116, 0.82
      %v125 = vmul.f32 %v117, 0.82
      %v126 = vadd.f32 %v118, 0.09
      %v127 = vadd.f32 %v119, 0.09
      %v128 = vadd.f32 %v120, 0.09
      %v129 = vadd.f32 %v121, 0.09
      %v130 = vadd.f32 %v122, 0.09
      %v131 = vadd.f32 %v123, 0.09
      %v132 = vadd.f32 %v124, 0.09
      %v133 = vadd.f32 %v125, 0.09
      %v134 = vmax.f32 %v86, 0.0
      %v135 = vmax.f32 %v87, 0.0
      %v136 = vmax.f32 %v88, 0.0
      %v137 = vmax.f32 %v89, 0.0
      %v138 = vmax.f32 %v90, 0.0
      %v139 = vmax.f32 %v91, 0.0
      %v140 = vmax.f32 %v92, 0.0
      %v141 = vmax.f32 %v93, 0.0
      %v142 = vmul.f32 %v86, %v126
      %v143 = vmul.f32 %v87, %v127
      %v144 = vmul.f32 %v88, %v128
      %v145 = vmul.f32 %v89, %v129
      %v146 = vmul.f32 %v90, %v130
      %v147 = vmul.f32 %v91, %v131
      %v148 = vmul.f32 %v92, %v132
      %v149 = vmul.f32 %v93, %v133
      %v150 = vsub.f32 %v134, %v142
      %v151 = vsub.f32 %v135, %v143
      %v152 = vsub.f32 %v136, %v144
      %v153 = vsub.f32 %v137, %v145
      %v154 = vsub.f32 %v138, %v146
      %v155 = vsub.f32 %v139, %v147
      %v156 = vsub.f32 %v140, %v148
      %v157 = vsub.f32 %v141, %v149
      %v158 = vand.u32 2147483647, %v86
      %v159 = vand.u32 2147483647, %v87
      %v160 = vand.u32 2147483647, %v88
      %v161 = vand.u32 2147483647, %v89
      %v162 = vand.u32 2147483647, %v90
      %v163 = vand.u32 2147483647, %v91
      %v164 = vand.u32 2147483647, %v92
      %v165 = vand.u32 2147483647, %v93
      %v166 = vsub.f32 0.0, %v158
      %v167 = vsub.f32 0.0, %v159
      %v168 = vsub.f32 0.0, %v160
      %v169 = vsub.f32 0.0, %v161
      %v170 = vsub.f32 0.0, %v162
      %v171 = vsub.f32 0.0, %v163
      %v172 = vsub.f32 0.0, %v164
      %v173 = vsub.f32 0.0, %v165
      %v174 = vmul.f32 %v166, 1.442695
      %v175 = vpow.pop %v174
      %v176 = vmul.f32 %v167, 1.442695
      %v177 = vpow.pop %v176
      %v178 = vmul.f32 %v168, 1.442695
      %v179 = vpow.pop %v178
      %v180 = vmul.f32 %v169, 1.442695
      %v181 = vpow.pop %v180
      %v182 = vmul.f32 %v170, 1.442695
      %v183 = vpow.pop %v182
      %v184 = vmul.f32 %v171, 1.442695
      %v185 = vpow.pop %v184
      %v186 = vmul.f32 %v172, 1.442695
      %v187 = vpow.pop %v186
      %v188 = vmul.f32 %v173, 1.442695
      %v189 = vpow.pop %v188
      %v190 = vadd.f32 %v175, 1.0
      %v191 = vlog2.pop %v190
      %v192 = vmul.f32 %v191, 0.6931472
      %v193 = vmul.f32 -0.5, %v175
      %v194 = vadd.f32 %v193, 1.0
      %v195 = vmul.f32 %v194, %v175
      %v196 = vand.u32 2147483647, %v175
      %vm197 = vcmp.lt.f32.partialorder %v196, 0.0004427343
      %v198 = vsel %vm197, %v195, %v192
      %v199 = vadd.f32 %v177, 1.0
      %v200 = vlog2.pop %v199
      %v201 = vmul.f32 %v200, 0.6931472
      %v202 = vmul.f32 -0.5, %v177
      %v203 = vadd.f32 %v202, 1.0
      %v204 = vmul.f32 %v203, %v177
      %v205 = vand.u32 2147483647, %v177
      %vm206 = vcmp.lt.f32.partialorder %v205, 0.0004427343
      %v207 = vsel %vm206, %v204, %v201
      %v208 = vadd.f32 %v179, 1.0
      %v209 = vlog2.pop %v208
      %v210 = vmul.f32 %v209, 0.6931472
      %v211 = vmul.f32 -0.5, %v179
      %v212 = vadd.f32 %v211, 1.0
      %v213 = vmul.f32 %v212, %v179
      %v214 = vand.u32 2147483647, %v179
      %vm215 = vcmp.lt.f32.partialorder %v214, 0.0004427343
      %v216 = vsel %vm215, %v213, %v210
      %v217 = vadd.f32 %v181, 1.0
      %v218 = vlog2.pop %v217
      %v219 = vmul.f32 %v218, 0.6931472
      %v220 = vmul.f32 -0.5, %v181
      %v221 = vadd.f32 %v220, 1.0
      %v222 = vmul.f32 %v221, %v181
      %v223 = vand.u32 2147483647, %v181
      %vm224 = vcmp.lt.f32.partialorder %v223, 0.0004427343
      %v225 = vsel %vm224, %v222, %v219
      %v226 = vadd.f32 %v183, 1.0
      %v227 = vlog2.pop %v226
      %v228 = vmul.f32 %v227, 0.6931472
      %v229 = vmul.f32 -0.5, %v183
      %v230 = vadd.f32 %v229, 1.0
      %v231 = vmul.f32 %v230, %v183
      %v232 = vand.u32 2147483647, %v183
      %vm233 = vcmp.lt.f32.partialorder %v232, 0.0004427343
      %v234 = vsel %vm233, %v231, %v228
      %v235 = vadd.f32 %v185, 1.0
      %v236 = vlog2.pop %v235
      %v237 = vmul.f32 %v236, 0.6931472
      %v238 = vmul.f32 -0.5, %v185
      %v239 = vadd.f32 %v238, 1.0
      %v240 = vmul.f32 %v239, %v185
      %v241 = vand.u32 2147483647, %v185
      %vm242 = vcmp.lt.f32.partialorder %v241, 0.0004427343
      %v243 = vsel %vm242, %v240, %v237
      %v244 = vadd.f32 %v187, 1.0
      %v245 = vlog2.pop %v244
      %v246 = vmul.f32 %v245, 0.6931472
      %v247 = vmul.f32 -0.5, %v187
      %v248 = vadd.f32 %v247, 1.0
      %v249 = vmul.f32 %v248, %v187
      %v250 = vand.u32 2147483647, %v187
      %vm251 = vcmp.lt.f32.partialorder %v250, 0.0004427343
      %v252 = vsel %vm251, %v249, %v246
      %v253 = vadd.f32 %v189, 1.0
      %v254 = vlog2.pop %v253
      %v255 = vmul.f32 %v254, 0.6931472
      %v256 = vmul.f32 -0.5, %v189
      %v257 = vadd.f32 %v256, 1.0
      %v258 = vmul.f32 %v257, %v189
      %v259 = vand.u32 2147483647, %v189
      %vm260 = vcmp.lt.f32.partialorder %v259, 0.0004427343
      %v261 = vsel %vm260, %v258, %v255
      %v262 = vadd.f32 %v150, %v198
      %v263 = vadd.f32 %v151, %v207
      %v264 = vadd.f32 %v152, %v216
      %v265 = vadd.f32 %v153, %v225
      %v266 = vadd.f32 %v154, %v234
      %v267 = vadd.f32 %v155, %v243
      %v268 = vadd.f32 %v156, %v252
      %v269 = vadd.f32 %v157, %v261
      %v270 = vadd.f32 %v262, %v263
      %v271 = vadd.f32 %v270, %v264
      %v272 = vadd.f32 %v271, %v265
      %v273 = vadd.f32 %v272, %v266
      %v274 = vadd.f32 %v273, %v267
      %v275 = vadd.f32 %v274, %v268
      %v276 = vadd.f32 %v275, %v269
      %v277 = vadd.f32 %v276, 0.0
      %v278 = vadd.f32 %v85, %v277
      %279 = vst [vmem:[#allocation7] sm:$0xff] %v278
    $region25: #{tpu_custom_call.1} parent=1 // pred_fallthru
      _
    // Predicated region
    $region26: #{tpu_custom_call.1} parent=1 // pred_check
      %p280 = pneg %p80
    $region27: #{tpu_custom_call.1} parent=1 // pred_check_branch
      %282 = sbr.rel (%p280) target = $region29
    $region28: #{tpu_custom_call.1} parent=1 // pred_region
      %v283 = vld [vmem:[#allocation7] sm:$0xff]
      %v284 = vld [vmem:[#allocation2] sm:$0xff]
      %v285 = vld [vmem:[#allocation2 + $0x8] sm:$0xff]
      %v286 = vld [vmem:[#allocation2 + $0x10] sm:$0xff]
      %v287 = vld [vmem:[#allocation2 + $0x18] sm:$0xff]
      %v288 = vld [vmem:[#allocation2 + $0x20] sm:$0xff]
      %v289 = vld [vmem:[#allocation2 + $0x28] sm:$0xff]
      %v290 = vld [vmem:[#allocation2 + $0x30] sm:$0xff]
      %v291 = vld [vmem:[#allocation2 + $0x38] sm:$0xff]
      %v292 = vld [vmem:[#allocation5] sm:$0x3]
      %v293 = vld [vmem:[#allocation5 + $0x2] sm:$0x3]
      %v294 = vld [vmem:[#allocation5 + $0x4] sm:$0x3]
      %v295 = vld [vmem:[#allocation5 + $0x6] sm:$0x3]
      %v296 = vld [vmem:[#allocation5 + $0x8] sm:$0x3]
      %v297 = vld [vmem:[#allocation5 + $0xa] sm:$0x3]
      %v298 = vld [vmem:[#allocation5 + $0xc] sm:$0x3]
      %v299 = vld [vmem:[#allocation5 + $0xe] sm:$0x3]
      %v300 = vunpack.c.0.s8 %v292
      %v301 = vunpack.c.0.s8 %v293
      %v302 = vunpack.c.0.s8 %v294
      %v303 = vunpack.c.0.s8 %v295
      %v304 = vunpack.c.0.s8 %v296
      %v305 = vunpack.c.0.s8 %v297
      %v306 = vunpack.c.0.s8 %v298
      %v307 = vunpack.c.0.s8 %v299
      %v308 = vcvt.s32.f32 %v300
      %v309 = vcvt.s32.f32 %v301
      %v310 = vcvt.s32.f32 %v302
      %v311 = vcvt.s32.f32 %v303
      %v312 = vcvt.s32.f32 %v304
      %v313 = vcvt.s32.f32 %v305
      %v314 = vcvt.s32.f32 %v306
      %v315 = vcvt.s32.f32 %v307
      %v316 = vmul.f32 %v308, 0.82
      %v317 = vmul.f32 %v309, 0.82
      %v318 = vmul.f32 %v310, 0.82
      %v319 = vmul.f32 %v311, 0.82
      %v320 = vmul.f32 %v312, 0.82
      %v321 = vmul.f32 %v313, 0.82
      %v322 = vmul.f32 %v314, 0.82
      %v323 = vmul.f32 %v315, 0.82
      %v324 = vadd.f32 %v316, 0.09
      %v325 = vadd.f32 %v317, 0.09
      %v326 = vadd.f32 %v318, 0.09
      %v327 = vadd.f32 %v319, 0.09
      %v328 = vadd.f32 %v320, 0.09
      %v329 = vadd.f32 %v321, 0.09
      %v330 = vadd.f32 %v322, 0.09
      %v331 = vadd.f32 %v323, 0.09
      %v332 = vmax.f32 %v284, 0.0
      %v333 = vmax.f32 %v285, 0.0
      %v334 = vmax.f32 %v286, 0.0
      %v335 = vmax.f32 %v287, 0.0
      %v336 = vmax.f32 %v288, 0.0
      %v337 = vmax.f32 %v289, 0.0
      %v338 = vmax.f32 %v290, 0.0
      %v339 = vmax.f32 %v291, 0.0
      %v340 = vmul.f32 %v284, %v324
      %v341 = vmul.f32 %v285, %v325
      %v342 = vmul.f32 %v286, %v326
      %v343 = vmul.f32 %v287, %v327
      %v344 = vmul.f32 %v288, %v328
      %v345 = vmul.f32 %v289, %v329
      %v346 = vmul.f32 %v290, %v330
      %v347 = vmul.f32 %v291, %v331
      %v348 = vsub.f32 %v332, %v340
      %v349 = vsub.f32 %v333, %v341
      %v350 = vsub.f32 %v334, %v342
      %v351 = vsub.f32 %v335, %v343
      %v352 = vsub.f32 %v336, %v344
      %v353 = vsub.f32 %v337, %v345
      %v354 = vsub.f32 %v338, %v346
      %v355 = vsub.f32 %v339, %v347
      %v356 = vand.u32 2147483647, %v284
      %v357 = vand.u32 2147483647, %v285
      %v358 = vand.u32 2147483647, %v286
      %v359 = vand.u32 2147483647, %v287
      %v360 = vand.u32 2147483647, %v288
      %v361 = vand.u32 2147483647, %v289
      %v362 = vand.u32 2147483647, %v290
      %v363 = vand.u32 2147483647, %v291
      %v364 = vsub.f32 0.0, %v356
      %v365 = vsub.f32 0.0, %v357
      %v366 = vsub.f32 0.0, %v358
      %v367 = vsub.f32 0.0, %v359
      %v368 = vsub.f32 0.0, %v360
      %v369 = vsub.f32 0.0, %v361
      %v370 = vsub.f32 0.0, %v362
      %v371 = vsub.f32 0.0, %v363
      %v372 = vmul.f32 %v364, 1.442695
      %v373 = vpow.pop %v372
      %v374 = vmul.f32 %v365, 1.442695
      %v375 = vpow.pop %v374
      %v376 = vmul.f32 %v366, 1.442695
      %v377 = vpow.pop %v376
      %v378 = vmul.f32 %v367, 1.442695
      %v379 = vpow.pop %v378
      %v380 = vmul.f32 %v368, 1.442695
      %v381 = vpow.pop %v380
      %v382 = vmul.f32 %v369, 1.442695
      %v383 = vpow.pop %v382
      %v384 = vmul.f32 %v370, 1.442695
      %v385 = vpow.pop %v384
      %v386 = vmul.f32 %v371, 1.442695
      %v387 = vpow.pop %v386
      %v388 = vadd.f32 %v373, 1.0
      %v389 = vlog2.pop %v388
      %v390 = vmul.f32 %v389, 0.6931472
      %v391 = vmul.f32 -0.5, %v373
      %v392 = vadd.f32 %v391, 1.0
      %v393 = vmul.f32 %v392, %v373
      %v394 = vand.u32 2147483647, %v373
      %vm395 = vcmp.lt.f32.partialorder %v394, 0.0004427343
      %v396 = vsel %vm395, %v393, %v390
      %v397 = vadd.f32 %v375, 1.0
      %v398 = vlog2.pop %v397
      %v399 = vmul.f32 %v398, 0.6931472
      %v400 = vmul.f32 -0.5, %v375
      %v401 = vadd.f32 %v400, 1.0
      %v402 = vmul.f32 %v401, %v375
      %v403 = vand.u32 2147483647, %v375
      %vm404 = vcmp.lt.f32.partialorder %v403, 0.0004427343
      %v405 = vsel %vm404, %v402, %v399
      %v406 = vadd.f32 %v377, 1.0
      %v407 = vlog2.pop %v406
      %v408 = vmul.f32 %v407, 0.6931472
      %v409 = vmul.f32 -0.5, %v377
      %v410 = vadd.f32 %v409, 1.0
      %v411 = vmul.f32 %v410, %v377
      %v412 = vand.u32 2147483647, %v377
      %vm413 = vcmp.lt.f32.partialorder %v412, 0.0004427343
      %v414 = vsel %vm413, %v411, %v408
      %v415 = vadd.f32 %v379, 1.0
      %v416 = vlog2.pop %v415
      %v417 = vmul.f32 %v416, 0.6931472
      %v418 = vmul.f32 -0.5, %v379
      %v419 = vadd.f32 %v418, 1.0
      %v420 = vmul.f32 %v419, %v379
      %v421 = vand.u32 2147483647, %v379
      %vm422 = vcmp.lt.f32.partialorder %v421, 0.0004427343
      %v423 = vsel %vm422, %v420, %v417
      %v424 = vadd.f32 %v381, 1.0
      %v425 = vlog2.pop %v424
      %v426 = vmul.f32 %v425, 0.6931472
      %v427 = vmul.f32 -0.5, %v381
      %v428 = vadd.f32 %v427, 1.0
      %v429 = vmul.f32 %v428, %v381
      %v430 = vand.u32 2147483647, %v381
      %vm431 = vcmp.lt.f32.partialorder %v430, 0.0004427343
      %v432 = vsel %vm431, %v429, %v426
      %v433 = vadd.f32 %v383, 1.0
      %v434 = vlog2.pop %v433
      %v435 = vmul.f32 %v434, 0.6931472
      %v436 = vmul.f32 -0.5, %v383
      %v437 = vadd.f32 %v436, 1.0
      %v438 = vmul.f32 %v437, %v383
      %v439 = vand.u32 2147483647, %v383
      %vm440 = vcmp.lt.f32.partialorder %v439, 0.0004427343
      %v441 = vsel %vm440, %v438, %v435
      %v442 = vadd.f32 %v385, 1.0
      %v443 = vlog2.pop %v442
      %v444 = vmul.f32 %v443, 0.6931472
      %v445 = vmul.f32 -0.5, %v385
      %v446 = vadd.f32 %v445, 1.0
      %v447 = vmul.f32 %v446, %v385
      %v448 = vand.u32 2147483647, %v385
      %vm449 = vcmp.lt.f32.partialorder %v448, 0.0004427343
      %v450 = vsel %vm449, %v447, %v444
      %v451 = vadd.f32 %v387, 1.0
      %v452 = vlog2.pop %v451
      %v453 = vmul.f32 %v452, 0.6931472
      %v454 = vmul.f32 -0.5, %v387
      %v455 = vadd.f32 %v454, 1.0
      %v456 = vmul.f32 %v455, %v387
      %v457 = vand.u32 2147483647, %v387
      %vm458 = vcmp.lt.f32.partialorder %v457, 0.0004427343
      %v459 = vsel %vm458, %v456, %v453
      %v460 = vadd.f32 %v348, %v396
      %v461 = vadd.f32 %v349, %v405
      %v462 = vadd.f32 %v350, %v414
      %v463 = vadd.f32 %v351, %v423
      %v464 = vadd.f32 %v352, %v432
      %v465 = vadd.f32 %v353, %v441
      %v466 = vadd.f32 %v354, %v450
      %v467 = vadd.f32 %v355, %v459
      %s468 = smul.u32 %s77, 64
      %v469 = vlaneseq
      %v470 = vshrl.u32 %v469, 7
      %v471 = vadd.s32 %v470, 8
      %v472 = vadd.s32 %v470, 16
      %v473 = vadd.s32 %v470, 24
      %v474 = vadd.s32 %v470, 32
      %v475 = vadd.s32 %v470, 40
      %v476 = vadd.s32 %v470, 48
      %v477 = vadd.s32 %v470, 56
      %v478 = vstv %s468
      %v479 = vadd.s32 %v478, %v470
      %v480 = vadd.s32 %v478, %v471
      %v481 = vadd.s32 %v478, %v472
      %v482 = vadd.s32 %v478, %v473
      %v483 = vadd.s32 %v478, %v474
      %v484 = vadd.s32 %v478, %v475
      %v485 = vadd.s32 %v478, %v476
      %v486 = vadd.s32 %v478, %v477
      %vm487 = vcmp.lt.s32.totalorder %v479, 48
      %vm488 = vcmp.lt.s32.totalorder %v480, 48
      %vm489 = vcmp.lt.s32.totalorder %v481, 48
      %vm490 = vcmp.lt.s32.totalorder %v482, 48
      %vm491 = vcmp.lt.s32.totalorder %v483, 48
      %vm492 = vcmp.lt.s32.totalorder %v484, 48
      %vm493 = vcmp.lt.s32.totalorder %v485, 48
      %vm494 = vcmp.lt.s32.totalorder %v486, 48
      %v495 = vsel %vm487, %v460, 0.0
      %v496 = vsel %vm488, %v461, 0.0
      %v497 = vsel %vm489, %v462, 0.0
      %v498 = vsel %vm490, %v463, 0.0
      %v499 = vsel %vm491, %v464, 0.0
      %v500 = vsel %vm492, %v465, 0.0
      %v501 = vsel %vm493, %v466, 0.0
      %v502 = vsel %vm494, %v467, 0.0
      %v503 = vadd.f32 %v495, %v496
      %v504 = vadd.f32 %v503, %v497
      %v505 = vadd.f32 %v504, %v498
      %v506 = vadd.f32 %v505, %v499
      %v507 = vadd.f32 %v506, %v500
      %v508 = vadd.f32 %v507, %v501
      %v509 = vadd.f32 %v508, %v502
      %v510 = vadd.f32 %v509, 0.0
      %v511 = vadd.f32 %v283, %v510
      %512 = vst [vmem:[#allocation7] sm:$0xff] %v511
    $region29: #{tpu_custom_call.1} parent=1 // pred_fallthru
      _
    // Predicated region
    $region30: #{tpu_custom_call.1} parent=1 // pred_check
      _
    $region31: #{tpu_custom_call.1} parent=1 // pred_check_branch
      %514 = sbr.rel (0) target = $region33
    $region32: #{tpu_custom_call.1} parent=1 // pred_region
      %s516 = ssub.s32 128, 128
      %517 = vsyncadd [#allocation4], %s516
      %s519 = sshll.u32 [#allocation7], 4
      %s520 = int_to_ptr.vmem [resolvable:$true] %s519
      %522 = dma.vmem_to_hbm [thread:$0]  %s520, 128, %s2, [#allocation4]
    $region33: #{tpu_custom_call.1} parent=1 // pred_fallthru
      _
    // Predicated region
    $region34: #{tpu_custom_call.1} parent=1 // pred_check
      _
    $region35: #{tpu_custom_call.1} parent=1 // pred_check_branch
      %524 = sbr.rel (0) target = $region37
    $region36: #{tpu_custom_call.1} parent=1 // pred_region
      %525 = dma.done [#allocation4], 128
    $region37: #{tpu_custom_call.1} parent=1 // pred_fallthru
      _
    %526 = vsyncpa [#allocation3], 1
    %527 = vsyncpa [#allocation6], 1
    %528 = vsyncpa [#allocation4], 1

</llo_original>
